<compile_context>
chip_gen: v6e
topology: v6e:2x2x1
jax: 0.10.0
libtpu: 0.0.40
codegen_flags: <defaults>
</compile_context>

<pallas_src>
import functools

import jax
import jax.numpy as jnp
import numpy as np
from jax.experimental import pallas as pl
from jax.experimental.pallas import tpu as pltpu


def _temporal_block_kernel(x_ref, w1_ref, b1_ref, w2_ref, b2_ref, *rest,
                           TL, K, dilation, pad, c_in, c_out, nb,
                           has_downsample, multi_tile, cdt):
    """One grid step = `nb` batch elements x one L tile of width TL (NCL layout).

    Refs:
      x_ref  : (nb, C_in, TL)
      w1_ref : (C_out, K*C_in)   taps concatenated along the contraction axis
      w2_ref : (C_out, K*C_out)
      b*_ref : (C_out, 1)        (f32)
      wd/bd  : (C_out, C_in)/(C_out,1)  only when C_in != C_out
      o_ref  : (nb, C_out, TL)
      x1_s   : (K*C_in,  nb*TL) VMEM im2col LHS for conv1 (compute dtype)
      x2_s   : (K*C_out, nb*TL) VMEM im2col LHS for conv2 (compute dtype)
      x_carry: (nb, C_in, pad)  last `pad` x columns of the previous L tile
      h_carry: (C_out, nb*pad)  last `pad` conv1-output columns of the prev tile
    """
    rest = list(rest)
    if has_downsample:
        wd_ref = rest.pop(0)
        bd_ref = rest.pop(0)
    o_ref = rest.pop(0)
    x1_s = rest.pop(0)
    x2_s = rest.pop(0)
    if multi_tile and pad > 0:
        x_carry = rest.pop(0)
        h_carry = rest.pop(0)

    # Per-tap causal left offset (static Python ints): tap j reads source column
    # t - z_j with z_j = pad - j*d;  z_0 = pad > ... > z_{K-1} = 0.
    zs = [pad - j * dilation for j in range(K)]
    r1_z0 = slice((K - 1) * c_in, K * c_in)     # unshifted-tap rows of x1_s (== x)
    r2_z0 = slice((K - 1) * c_out, K * c_out)   # unshifted-tap rows of x2_s (== h)

    # ---- halo-carry reset / one-time pad-column zeroing ------------------------
    if pad > 0:
        if multi_tile:
            @pl.when(pl.program_id(1) == 0)      # start of each batch tile's L sweep
            def _():
                x_carry[...] = jnp.zeros_like(x_carry)
                h_carry[...] = jnp.zeros_like(h_carry)
        else:
            # Single L tile: the pad columns below are never overwritten by the
            # data copies, so zero them exactly once (first grid step only).
            @pl.when(pl.program_id(0) == 0)
            def _():
                for j, z in enumerate(zs):
                    zc = min(z, TL)
                    if zc <= 0:
                        continue
                    for i in range(nb):
                        x1_s[j * c_in:(j + 1) * c_in, i * TL:i * TL + zc] = (
                            jnp.zeros((c_in, zc), cdt))
                        x2_s[j * c_out:(j + 1) * c_out, i * TL:i * TL + zc] = (
                            jnp.zeros((c_out, zc), cdt))

    # ---- conv1 im2col: K shifted views of x (+ left halo from carry) -----------
    # (Per-batch work here is only streaming ref copies; the heavy compute below
    #  is batch-fused, so the static nb unroll carries no long vreg live ranges.)
    for i in range(nb):
        for j, z in enumerate(zs):
            rows = slice(j * c_in, (j + 1) * c_in)
            if multi_tile and z > 0:
                x1_s[rows, i * TL:i * TL + z] = x_carry[i, :, pad - z:pad]
            if z < TL:
                x1_s[rows, i * TL + z:(i + 1) * TL] = (
                    x_ref[i, :, 0:TL - z].astype(cdt))
        if multi_tile and pad > 0:
            x_carry[i, :, :] = x_ref[i, :, TL - pad:TL].astype(cdt)

    # ---- conv1: ONE fused MXU matmul over all nb batch segments ----------------
    h = jnp.dot(w1_ref[...], x1_s[...], preferred_element_type=jnp.float32)
    h = jnp.maximum(h + b1_ref[...], 0.0)          # (C_out, nb*TL), f32
    # TODO(synk): dropout1/dropout2 are identity in eval mode (no RNG applied).

    # conv1 output goes straight into the z==0 tap rows of the conv2 scratch; the
    # shifted taps are then built with VMEM ref-to-ref copies from that region.
    x2_s[r2_z0, :] = h.astype(cdt)

    for i in range(nb):
        for j, z in list(enumerate(zs))[:-1]:       # taps with z > 0
            rows = slice(j * c_out, (j + 1) * c_out)
            if multi_tile and z > 0:
                x2_s[rows, i * TL:i * TL + z] = (
                    h_carry[:, i * pad + (pad - z):(i + 1) * pad])
            if z < TL:
                x2_s[rows, i * TL + z:(i + 1) * TL] = (
                    x2_s[r2_z0, i * TL:i * TL + (TL - z)])
        if multi_tile and pad > 0:
            h_carry[:, i * pad:(i + 1) * pad] = (
                x2_s[r2_z0, i * TL + TL - pad:(i + 1) * TL])

    # ---- conv2 + implicit chomp (only the first TL cols of each segment) -------
    out2 = jnp.dot(w2_ref[...], x2_s[...], preferred_element_type=jnp.float32)
    out2 = jnp.maximum(out2 + b2_ref[...], 0.0)     # (C_out, nb*TL), f32

    # ---- residual + final ReLU --------------------------------------------------
    if has_downsample:
        # Reuse the z==0 rows of x1_s as the flattened (C_in, nb*TL) x operand.
        res = jnp.dot(wd_ref[...], x1_s[r1_z0, :],
                      preferred_element_type=jnp.float32) + bd_ref[...]
        y = jnp.maximum(out2 + res, 0.0)
        for i in range(nb):
            o_ref[i] = y[:, i * TL:(i + 1) * TL].astype(o_ref.dtype)
    else:
        for i in range(nb):
            res_i = x_ref[i].astype(jnp.float32)    # exact f32 identity residual
            o_ref[i] = jnp.maximum(out2[:, i * TL:(i + 1) * TL] + res_i,
                                   0.0).astype(o_ref.dtype)


def _round_up(x, m):
    return -(-x // m) * m


def _choose_tiles(N, L, c_in, c_out, K, pad, x_bytes, c_bytes, budget,
                  max_seq_tile=None):
    """Pick (nb, TL) so one grid step's VMEM footprint fits `budget`."""
    nb_cap = min(8, N)
    if N >= 2:
        nb_cap = min(nb_cap, _round_up(N, 2) // 2)   # >= 2 batch grid steps (v7x)

    def cost(nb, TL):
        blocks = 2 * nb * TL * (c_in + c_out) * x_bytes            # dbl-buffered in/out
        scratch = K * (c_in + c_out) * nb * TL * c_bytes           # im2col scratches
        scratch += (c_in + c_out) * nb * max(pad, 1) * c_bytes     # halo carries
        temps = 3 * c_out * nb * TL * 4                            # f32 h/out2/res
        weights = 2 * 4 * (K * c_in * c_out + K * c_out * c_out
                           + c_in * c_out + 3 * c_out)
        return blocks + scratch + temps + weights

    L_cap = L if max_seq_tile is None else min(L, max_seq_tile)
    if L_cap == L and cost(1, L) <= budget:
        TL = L                                     # whole sequence resident
    else:
        # L tile: multiple of 128, at least `pad`, as large as fits the budget.
        TL = max(128, _round_up(max(pad, 1), 128))
        while TL * 2 <= L_cap and cost(1, TL * 2) <= budget:
            TL *= 2
        TL = min(TL, L)
    nb = 1
    while nb < nb_cap and cost(nb + 1, TL) <= budget:
        nb += 1
    return nb, TL


def temporal_block_forward(x, params, *, kernel_size, dilation,
                           use_bf16=False, max_seq_tile=None):
    """x: (N, C_in, L) float32 (PyTorch NCL).  Returns (N, C_out, L)."""
    w1, b1, w2, b2, wd, bd = params
    N, c_in, L = x.shape
    c_out = w1.shape[0]
    K = kernel_size
    pad = (K - 1) * dilation
    has_downsample = wd is not None

    cdt = jnp.bfloat16 if use_bf16 else jnp.float32
    c_bytes = 2 if use_bf16 else 4

    # ---- VMEM budgeting + explicit scoped limit (fits 64 MiB v7x too) ----------
    try:
        vmem_phys = int(pltpu.get_tpu_info().vmem_capacity_bytes)
    except Exception:
        vmem_phys = 64 << 20
    vmem_limit = min(vmem_phys * 3 // 4, 112 << 20)
    budget = int(vmem_limit * 0.85)

    nb, TL = _choose_tiles(N, L, c_in, c_out, K, pad,
                           x.dtype.itemsize, c_bytes, budget, max_seq_tile)
    n_b = pl.cdiv(N, nb)
    n_t = pl.cdiv(L, TL)
    multi_tile = n_t > 1
    grid = (n_b, n_t)

    # ---- parameter re-arrangement only (tiny; activations never round-trip) ----
    # torch Conv1d weight (C_out, C_in, K) -> (C_out, K*C_in), taps stacked along
    # the contraction axis to match the im2col row order j*C_in + c.
    w1c = jnp.transpose(w1, (0, 2, 1)).reshape(c_out, K * c_in).astype(cdt)
    w2c = jnp.transpose(w2, (0, 2, 1)).reshape(c_out, K * c_out).astype(cdt)
    b1c = b1[:, None].astype(jnp.float32)
    b2c = b2[:, None].astype(jnp.float32)

    in_specs = [
        pl.BlockSpec((nb, c_in, TL), lambda b, t: (b, 0, t)),
        pl.BlockSpec((c_out, K * c_in), lambda b, t: (0, 0)),
        pl.BlockSpec((c_out, 1), lambda b, t: (0, 0)),
        pl.BlockSpec((c_out, K * c_out), lambda b, t: (0, 0)),
        pl.BlockSpec((c_out, 1), lambda b, t: (0, 0)),
    ]
    args = [x, w1c, b1c, w2c, b2c]
    if has_downsample:
        wdc = wd[:, :, 0].astype(cdt)              # (C_out, C_in)
        bdc = bd[:, None].astype(jnp.float32)
        in_specs += [pl.BlockSpec((c_out, c_in), lambda b, t: (0, 0)),
                     pl.BlockSpec((c_out, 1), lambda b, t: (0, 0))]
        args += [wdc, bdc]

    scratch_shapes = [pltpu.VMEM((K * c_in, nb * TL), cdt),
                      pltpu.VMEM((K * c_out, nb * TL), cdt)]
    if multi_tile and pad > 0:
        scratch_shapes += [pltpu.VMEM((nb, c_in, pad), cdt),
                           pltpu.VMEM((c_out, nb * pad), cdt)]

    kernel = functools.partial(
        _temporal_block_kernel, TL=TL, K=K, dilation=dilation, pad=pad,
        c_in=c_in, c_out=c_out, nb=nb, has_downsample=has_downsample,
        multi_tile=multi_tile, cdt=cdt)

    flops = 2 * N * L * (K * c_in * c_out + K * c_out * c_out
                         + (c_in * c_out if has_downsample else 0))
    bytes_accessed = (x.dtype.itemsize * N * c_in * L + 4 * N * c_out * L
                      + c_bytes * (K * c_in * c_out + K * c_out * c_out)
                      + 4 * 2 * c_out
                      + (c_bytes * c_in * c_out + 4 * c_out if has_downsample else 0))

    out = pl.pallas_call(
        kernel,
        out_shape=jax.ShapeDtypeStruct((N, c_out, L), x.dtype),
        grid_spec=pltpu.PrefetchScalarGridSpec(
            num_scalar_prefetch=0,
            grid=grid,
            in_specs=in_specs,
            out_specs=pl.BlockSpec((nb, c_out, TL), lambda b, t: (b, 0, t)),
            scratch_shapes=scratch_shapes,
        ),
        compiler_params=pltpu.CompilerParams(
            dimension_semantics=("parallel", "arbitrary"),
            vmem_limit_bytes=int(vmem_limit)),
        cost_estimate=pl.CostEstimate(flops=flops, transcendentals=0,
                                      bytes_accessed=bytes_accessed),
    )(*args)
    return out


# ---------------- pure-JAX reference (mirrors the PyTorch forward) --------------
def _conv1d_ref(x, w, b, dilation, padding):
    out = jax.lax.conv_general_dilated(
        x, w, window_strides=(1,), padding=[(padding, padding)],
        rhs_dilation=(dilation,), dimension_numbers=("NCH", "OIH", "NCH"),
        precision=jax.lax.Precision.HIGHEST)
    return out + b[None, :, None]


def temporal_block_ref(x, params, kernel_size, dilation):
    w1, b1, w2, b2, wd, bd = params
    pad = (kernel_size - 1) * dilation
    out = jax.nn.relu(_conv1d_ref(x, w1, b1, dilation, pad))
    out = jax.nn.relu(_conv1d_ref(out, w2, b2, dilation, pad))
    out = out[:, :, :x.shape[2]]
    res = x if wd is None else _conv1d_ref(x, wd, bd, 1, 0)
    return jax.nn.relu(out + res)


if __name__ == "__main__":
    key = jax.random.PRNGKey(0)

    def make_params(k, c_in, c_out, K, with_downsample):
        ks = jax.random.split(k, 6)
        w1 = jax.random.normal(ks[0], (c_out, c_in, K), jnp.float32) * 0.3
        b1 = jax.random.normal(ks[1], (c_out,), jnp.float32) * 0.1
        w2 = jax.random.normal(ks[2], (c_out, c_out, K), jnp.float32) * 0.3
        b2 = jax.random.normal(ks[3], (c_out,), jnp.float32) * 0.1
        if with_downsample:
            wd = jax.random.normal(ks[4], (c_out, c_in, 1), jnp.float32) * 0.3
            bd = jax.random.normal(ks[5], (c_out,), jnp.float32) * 0.1
        else:
            wd = bd = None
        return (w1, b1, w2, b2, wd, bd)

    # Tolerances accommodate MXU default-precision differences between XLA's conv
    # reference and the in-kernel dots across TPU generations; structural bugs
    # would produce O(1) mismatches and still be caught.
    k1, k2, k3, k4 = jax.random.split(key, 4)

    # Case 1: C_in != C_out -> 1x1 downsample residual; single L tile; f32.
    N, C_in, C_out, L, K, d = 2, 4, 8, 16, 3, 2
    x = jax.random.normal(k1, (N, C_in, L), jnp.float32)
    p = make_params(k2, C_in, C_out, K, True)
    out = jax.block_until_ready(
        temporal_block_forward(x, p, kernel_size=K, dilation=d))
    ref = temporal_block_ref(x, p, K, d)
    np.testing.assert_allclose(np.asarray(out), np.asarray(ref),
                               rtol=1e-2, atol=2e-2)

    # Case 2: C_in == C_out -> identity residual; exercises the L-tiling +
    # halo-carry path (TL=128, two L tiles); f32.
    C, L2 = 8, 256
    x2 = jax.random.normal(k3, (N, C, L2), jnp.float32)
    p2 = make_params(k4, C, C, K, False)
    out2 = jax.block_until_ready(
        temporal_block_forward(x2, p2, kernel_size=K, dilation=d,
                               max_seq_tile=128))
    ref2 = temporal_block_ref(x2, p2, K, d)
    np.testing.assert_allclose(np.asarray(out2), np.asarray(ref2),
                               rtol=1e-2, atol=2e-2)

    # Case 3: bf16 matmul operands (recommended on v6e/v7x); looser tolerance.
    out3 = jax.block_until_ready(
        temporal_block_forward(x, p, kernel_size=K, dilation=d, use_bf16=True))
    np.testing.assert_allclose(np.asarray(out3), np.asarray(ref),
                               rtol=5e-2, atol=5e-2)

    print("KERNEL_OK")
</pallas_src>

<mosaic_0001>
module attributes {stable_mosaic.version = 11 : i64} {
  func.func @_temporal_block_kernel(%arg0: i32, %arg1: i32, %arg2: memref<1x4x16xf32, #tpu.memory_space<vmem>>, %arg3: memref<8x12xf32, #tpu.memory_space<vmem>>, %arg4: memref<8x1xf32, #tpu.memory_space<vmem>>, %arg5: memref<8x24xf32, #tpu.memory_space<vmem>>, %arg6: memref<8x1xf32, #tpu.memory_space<vmem>>, %arg7: memref<8x4xf32, #tpu.memory_space<vmem>>, %arg8: memref<8x1xf32, #tpu.memory_space<vmem>>, %arg9: memref<1x8x16xf32, #tpu.memory_space<vmem>>, %arg10: memref<12x16xf32, #tpu.memory_space<vmem>>, %arg11: memref<24x16xf32, #tpu.memory_space<vmem>>) attributes {dimension_semantics = [#tpu.dimension_semantics<parallel>, #tpu.dimension_semantics<arbitrary>], iteration_bounds = array<i64: 2, 1>, scalar_prefetch = 0 : i64, scratch_operands = 2 : i64, tpu.core_type = #tpu.core_type<tc>, window_params = [{transform_indices = @transform_0, window_bounds = array<i64: 1, 4, 16>}, {pipeline_mode = #tpu.pipeline_mode<synchronous>, transform_indices = @transform_1, window_bounds = array<i64: 8, 12>}, {pipeline_mode = #tpu.pipeline_mode<synchronous>, transform_indices = @transform_2, window_bounds = array<i64: 8, 1>}, {pipeline_mode = #tpu.pipeline_mode<synchronous>, transform_indices = @transform_3, window_bounds = array<i64: 8, 24>}, {pipeline_mode = #tpu.pipeline_mode<synchronous>, transform_indices = @transform_4, window_bounds = array<i64: 8, 1>}, {pipeline_mode = #tpu.pipeline_mode<synchronous>, transform_indices = @transform_5, window_bounds = array<i64: 8, 4>}, {pipeline_mode = #tpu.pipeline_mode<synchronous>, transform_indices = @transform_6, window_bounds = array<i64: 8, 1>}, {transform_indices = @transform_7, window_bounds = array<i64: 1, 8, 16>}]} {
    %c0_i32 = arith.constant 0 : i32
    %0 = arith.cmpi eq, %arg0, %c0_i32 : i32
    %1 = arith.extui %0 : i1 to i32
    %c0_i32_0 = arith.constant 0 : i32
    %2 = arith.cmpi ne, %1, %c0_i32_0 : i32
    scf.if %2 {
      %cst_47 = arith.constant 0.000000e+00 : f32
      %45 = vector.broadcast %cst_47 : f32 to vector<4x4xf32>
      %c0_48 = arith.constant 0 : index
      %c0_49 = arith.constant 0 : index
      %46 = vector.load %arg10[%c0_48, %c0_49] : memref<12x16xf32, #tpu.memory_space<vmem>>, vector<4x4xf32>
      tpu.vector_store %arg10[%c0_48, %c0_49], %45 {strides = array<i32>} : memref<12x16xf32, #tpu.memory_space<vmem>>, vector<4x4xf32>,
      %cst_50 = arith.constant 0.000000e+00 : f32
      %47 = vector.broadcast %cst_50 : f32 to vector<8x4xf32>
      %c0_51 = arith.constant 0 : index
      %c0_52 = arith.constant 0 : index
      %48 = vector.load %arg11[%c0_51, %c0_52] : memref<24x16xf32, #tpu.memory_space<vmem>>, vector<8x4xf32>
      tpu.vector_store %arg11[%c0_51, %c0_52], %47 {strides = array<i32>} : memref<24x16xf32, #tpu.memory_space<vmem>>, vector<8x4xf32>,
      %cst_53 = arith.constant 0.000000e+00 : f32
      %49 = vector.broadcast %cst_53 : f32 to vector<4x2xf32>
      %c4_54 = arith.constant 4 : index
      %c0_55 = arith.constant 0 : index
      %50 = vector.load %arg10[%c4_54, %c0_55] : memref<12x16xf32, #tpu.memory_space<vmem>>, vector<4x2xf32>
      tpu.vector_store %arg10[%c4_54, %c0_55], %49 {strides = array<i32>} : memref<12x16xf32, #tpu.memory_space<vmem>>, vector<4x2xf32>,
      %cst_56 = arith.constant 0.000000e+00 : f32
      %51 = vector.broadcast %cst_56 : f32 to vector<8x2xf32>
      %c8_57 = arith.constant 8 : index
      %c0_58 = arith.constant 0 : index
      %52 = vector.load %arg11[%c8_57, %c0_58] : memref<24x16xf32, #tpu.memory_space<vmem>>, vector<8x2xf32>
      tpu.vector_store %arg11[%c8_57, %c0_58], %51 {strides = array<i32>} : memref<24x16xf32, #tpu.memory_space<vmem>>, vector<8x2xf32>,
    } else {
    }
    %c0 = arith.constant 0 : index
    %c0_1 = arith.constant 0 : index
    %c0_2 = arith.constant 0 : index
    %3 = vector.load %arg2[%c0, %c0_1, %c0_2] : memref<1x4x16xf32, #tpu.memory_space<vmem>>, vector<1x4x12xf32>
    %4 = vector.shape_cast %3 : vector<1x4x12xf32> to vector<4x12xf32>
    %c0_3 = arith.constant 0 : index
    %c4 = arith.constant 4 : index
    %5 = vector.load %arg10[%c0_3, %c4] : memref<12x16xf32, #tpu.memory_space<vmem>>, vector<4x12xf32>
    tpu.vector_store %arg10[%c0_3, %c4], %4 {strides = array<i32>} : memref<12x16xf32, #tpu.memory_space<vmem>>, vector<4x12xf32>,
    %c0_4 = arith.constant 0 : index
    %c0_5 = arith.constant 0 : index
    %c0_6 = arith.constant 0 : index
    %6 = vector.load %arg2[%c0_4, %c0_5, %c0_6] : memref<1x4x16xf32, #tpu.memory_space<vmem>>, vector<1x4x14xf32>
    %7 = vector.shape_cast %6 : vector<1x4x14xf32> to vector<4x14xf32>
    %c4_7 = arith.constant 4 : index
    %c2 = arith.constant 2 : index
    %8 = vector.load %arg10[%c4_7, %c2] : memref<12x16xf32, #tpu.memory_space<vmem>>, vector<4x14xf32>
    tpu.vector_store %arg10[%c4_7, %c2], %7 {strides = array<i32>} : memref<12x16xf32, #tpu.memory_space<vmem>>, vector<4x14xf32>,
    %c0_8 = arith.constant 0 : index
    %c0_9 = arith.constant 0 : index
    %c0_10 = arith.constant 0 : index
    %9 = vector.load %arg2[%c0_8, %c0_9, %c0_10] : memref<1x4x16xf32, #tpu.memory_space<vmem>>, vector<1x4x16xf32>
    %10 = vector.shape_cast %9 : vector<1x4x16xf32> to vector<4x16xf32>
    %c8 = arith.constant 8 : index
    %c0_11 = arith.constant 0 : index
    %11 = vector.load %arg10[%c8, %c0_11] : memref<12x16xf32, #tpu.memory_space<vmem>>, vector<4x16xf32>
    tpu.vector_store %arg10[%c8, %c0_11], %10 {strides = array<i32>} : memref<12x16xf32, #tpu.memory_space<vmem>>, vector<4x16xf32>,
    %c0_12 = arith.constant 0 : index
    %c0_13 = arith.constant 0 : index
    %12 = vector.load %arg3[%c0_12, %c0_13] : memref<8x12xf32, #tpu.memory_space<vmem>>, vector<8x12xf32>
    %c0_14 = arith.constant 0 : index
    %c0_15 = arith.constant 0 : index
    %13 = vector.load %arg10[%c0_14, %c0_15] : memref<12x16xf32, #tpu.memory_space<vmem>>, vector<12x16xf32>
    %cst = arith.constant dense<0.000000e+00> : vector<8x16xf32>
    %14 = tpu.matmul %12, %13, %cst {dimension_numbers = #tpu.dot_dimension_numbers<[1], [0], [0], [1], [0, 0, 1, 1], [], []>} : vector<8x12xf32>, vector<12x16xf32>, vector<8x16xf32> -> vector<8x16xf32>
    %c0_16 = arith.constant 0 : index
    %c0_17 = arith.constant 0 : index
    %15 = vector.load %arg4[%c0_16, %c0_17] : memref<8x1xf32, #tpu.memory_space<vmem>>, vector<8x1xf32>
    %16 = vector.broadcast %15 : vector<8x1xf32> to vector<8x16xf32>
    %17 = arith.addf %14, %16 : vector<8x16xf32>
    %cst_18 = arith.constant 0.000000e+00 : f32
    %18 = vector.broadcast %cst_18 : f32 to vector<8x16xf32>
    %19 = arith.maximumf %17, %18 : vector<8x16xf32>
    %c16 = arith.constant 16 : index
    %c0_19 = arith.constant 0 : index
    %20 = vector.load %arg11[%c16, %c0_19] : memref<24x16xf32, #tpu.memory_space<vmem>>, vector<8x16xf32>
    tpu.vector_store %arg11[%c16, %c0_19], %19 {strides = array<i32>} : memref<24x16xf32, #tpu.memory_space<vmem>>, vector<8x16xf32>,
    %c16_20 = arith.constant 16 : index
    %c0_21 = arith.constant 0 : index
    %21 = vector.load %arg11[%c16_20, %c0_21] : memref<24x16xf32, #tpu.memory_space<vmem>>, vector<8x12xf32>
    %c0_22 = arith.constant 0 : index
    %c4_23 = arith.constant 4 : index
    %22 = vector.load %arg11[%c0_22, %c4_23] : memref<24x16xf32, #tpu.memory_space<vmem>>, vector<8x12xf32>
    tpu.vector_store %arg11[%c0_22, %c4_23], %21 {strides = array<i32>} : memref<24x16xf32, #tpu.memory_space<vmem>>, vector<8x12xf32>,
    %c16_24 = arith.constant 16 : index
    %c0_25 = arith.constant 0 : index
    %23 = vector.load %arg11[%c16_24, %c0_25] : memref<24x16xf32, #tpu.memory_space<vmem>>, vector<8x14xf32>
    %c8_26 = arith.constant 8 : index
    %c2_27 = arith.constant 2 : index
    %24 = vector.load %arg11[%c8_26, %c2_27] : memref<24x16xf32, #tpu.memory_space<vmem>>, vector<8x14xf32>
    tpu.vector_store %arg11[%c8_26, %c2_27], %23 {strides = array<i32>} : memref<24x16xf32, #tpu.memory_space<vmem>>, vector<8x14xf32>,
    %c0_28 = arith.constant 0 : index
    %c0_29 = arith.constant 0 : index
    %25 = vector.load %arg5[%c0_28, %c0_29] : memref<8x24xf32, #tpu.memory_space<vmem>>, vector<8x24xf32>
    %c0_30 = arith.constant 0 : index
    %c0_31 = arith.constant 0 : index
    %26 = vector.load %arg11[%c0_30, %c0_31] : memref<24x16xf32, #tpu.memory_space<vmem>>, vector<24x16xf32>
    %cst_32 = arith.constant dense<0.000000e+00> : vector<8x16xf32>
    %27 = tpu.matmul %25, %26, %cst_32 {dimension_numbers = #tpu.dot_dimension_numbers<[1], [0], [0], [1], [0, 0, 1, 1], [], []>} : vector<8x24xf32>, vector<24x16xf32>, vector<8x16xf32> -> vector<8x16xf32>
    %c0_33 = arith.constant 0 : index
    %c0_34 = arith.constant 0 : index
    %28 = vector.load %arg6[%c0_33, %c0_34] : memref<8x1xf32, #tpu.memory_space<vmem>>, vector<8x1xf32>
    %29 = vector.broadcast %28 : vector<8x1xf32> to vector<8x16xf32>
    %30 = arith.addf %27, %29 : vector<8x16xf32>
    %cst_35 = arith.constant 0.000000e+00 : f32
    %31 = vector.broadcast %cst_35 : f32 to vector<8x16xf32>
    %32 = arith.maximumf %30, %31 : vector<8x16xf32>
    %c0_36 = arith.constant 0 : index
    %c0_37 = arith.constant 0 : index
    %33 = vector.load %arg7[%c0_36, %c0_37] : memref<8x4xf32, #tpu.memory_space<vmem>>, vector<8x4xf32>
    %c8_38 = arith.constant 8 : index
    %c0_39 = arith.constant 0 : index
    %34 = vector.load %arg10[%c8_38, %c0_39] : memref<12x16xf32, #tpu.memory_space<vmem>>, vector<4x16xf32>
    %cst_40 = arith.constant dense<0.000000e+00> : vector<8x16xf32>
    %35 = tpu.matmul %33, %34, %cst_40 {dimension_numbers = #tpu.dot_dimension_numbers<[1], [0], [0], [1], [0, 0, 1, 1], [], []>} : vector<8x4xf32>, vector<4x16xf32>, vector<8x16xf32> -> vector<8x16xf32>
    %c0_41 = arith.constant 0 : index
    %c0_42 = arith.constant 0 : index
    %36 = vector.load %arg8[%c0_41, %c0_42] : memref<8x1xf32, #tpu.memory_space<vmem>>, vector<8x1xf32>
    %37 = vector.broadcast %36 : vector<8x1xf32> to vector<8x16xf32>
    %38 = arith.addf %35, %37 : vector<8x16xf32>
    %39 = arith.addf %32, %38 : vector<8x16xf32>
    %cst_43 = arith.constant 0.000000e+00 : f32
    %40 = vector.broadcast %cst_43 : f32 to vector<8x16xf32>
    %41 = arith.maximumf %39, %40 : vector<8x16xf32>
    %c0_44 = arith.constant 0 : index
    %c0_45 = arith.constant 0 : index
    %c0_46 = arith.constant 0 : index
    %42 = vector.load %arg9[%c0_44, %c0_45, %c0_46] : memref<1x8x16xf32, #tpu.memory_space<vmem>>, vector<1x8x16xf32>
    %43 = vector.shape_cast %42 : vector<1x8x16xf32> to vector<8x16xf32>
    %44 = vector.shape_cast %41 : vector<8x16xf32> to vector<1x8x16xf32>
    tpu.vector_store %arg9[%c0_44, %c0_45, %c0_46], %44 {strides = array<i32>} : memref<1x8x16xf32, #tpu.memory_space<vmem>>, vector<1x8x16xf32>,
    return
  }
  func.func @transform_0(%arg0: i32, %arg1: i32) -> (i32, i32, i32) {
    %c0_i32 = arith.constant 0 : i32
    %c0_i32_0 = arith.constant 0 : i32
    return %arg0, %c0_i32, %arg1 : i32, i32, i32
  }
  func.func @transform_1(%arg0: i32, %arg1: i32) -> (i32, i32) {
    %c0_i32 = arith.constant 0 : i32
    %c0_i32_0 = arith.constant 0 : i32
    %c0_i32_1 = arith.constant 0 : i32
    return %c0_i32, %c0_i32_0 : i32, i32
  }
  func.func @transform_2(%arg0: i32, %arg1: i32) -> (i32, i32) {
    %c0_i32 = arith.constant 0 : i32
    %c0_i32_0 = arith.constant 0 : i32
    %c0_i32_1 = arith.constant 0 : i32
    return %c0_i32, %c0_i32_0 : i32, i32
  }
  func.func @transform_3(%arg0: i32, %arg1: i32) -> (i32, i32) {
    %c0_i32 = arith.constant 0 : i32
    %c0_i32_0 = arith.constant 0 : i32
    %c0_i32_1 = arith.constant 0 : i32
    return %c0_i32, %c0_i32_0 : i32, i32
  }
  func.func @transform_4(%arg0: i32, %arg1: i32) -> (i32, i32) {
    %c0_i32 = arith.constant 0 : i32
    %c0_i32_0 = arith.constant 0 : i32
    %c0_i32_1 = arith.constant 0 : i32
    return %c0_i32, %c0_i32_0 : i32, i32
  }
  func.func @transform_5(%arg0: i32, %arg1: i32) -> (i32, i32) {
    %c0_i32 = arith.constant 0 : i32
    %c0_i32_0 = arith.constant 0 : i32
    %c0_i32_1 = arith.constant 0 : i32
    return %c0_i32, %c0_i32_0 : i32, i32
  }
  func.func @transform_6(%arg0: i32, %arg1: i32) -> (i32, i32) {
    %c0_i32 = arith.constant 0 : i32
    %c0_i32_0 = arith.constant 0 : i32
    %c0_i32_1 = arith.constant 0 : i32
    return %c0_i32, %c0_i32_0 : i32, i32
  }
  func.func @transform_7(%arg0: i32, %arg1: i32) -> (i32, i32, i32) {
    %c0_i32 = arith.constant 0 : i32
    %c0_i32_0 = arith.constant 0 : i32
    return %arg0, %c0_i32, %arg1 : i32, i32, i32
  }
}

</mosaic_0001>

<llo_original>
// kernel: tpu_custom_call.1
$region0: #{tpu_custom_call.1}
  #allocation0 [shape = 'u32[]', space=smem, size = 0x4, offset = 0x4, fixed_abs, tag = 'smem constant byte address 0x4 - core index']
  #allocation1 [shape = 'u32[144,128]{1,0:T(1,128)}', space=vmem, size = 0x12000, scoped, tag = 'internal scratch']
  #allocation2 [shape = 'f32[12,16]{1,0:T(8,128)}', space=vmem, size = 0x2000, scoped, tag = 'scratch operand']
  #allocation3 [shape = 'f32[24,16]{1,0:T(8,128)}', space=vmem, size = 0x3000, scoped, tag = 'scratch operand']
  %s0 = inlined_call_operand.vmem [shape: f32[2,4,16], index: 0, kind: input, shape index: {}]
  %s1 = inlined_call_operand.vmem [shape: f32[8,12], index: 1, kind: input, shape index: {}]
  %s2 = inlined_call_operand.vmem [shape: f32[8,1], index: 2, kind: input, shape index: {}]
  %s3 = inlined_call_operand.vmem [shape: f32[8,24], index: 3, kind: input, shape index: {}]
  %s4 = inlined_call_operand.vmem [shape: f32[8,1], index: 4, kind: input, shape index: {}]
  %s5 = inlined_call_operand.vmem [shape: f32[8,4], index: 5, kind: input, shape index: {}]
  %s6 = inlined_call_operand.vmem [shape: f32[8,1], index: 6, kind: input, shape index: {}]
  %s7 = inlined_call_operand.hbm [shape: f32[2,8,16], index: 7, kind: output, shape index: {}]
  %s8 = sld [smem:[#allocation0]]
  $region65: #{tpu_custom_call.1} parent=0
    _
  %s10 = ssub.s32 1, %s8
  %s11 = scalar_select 0, %s10, %s8
  $region1: #{tpu_custom_call.1} parent=0
    #allocation4 [shape = 'u8[8192]{0}', space=vmem, size = 0x2000, scoped, tag = 'output window, operand 0']
    #allocation5 [shape = 's32[2]{0}', space=sflag, size = 0x8, scoped, tag = 'scoped memory for tpu_custom_call.1']
    %12 = vsyncpa [#allocation5], 0
    %s13 = scalar_lea.sflag [#allocation5], 1
    %14 = vsyncpa %s13, 0
    loop: start=0, step=1, limit=4
    $region2: #{tpu_custom_call.1} parent=1 // loop_pre_header
      _
    $region3: #{tpu_custom_call.1} parent=1 // loop_header
      %s16 = sphi 0, %s20
      %p17 = scmp.ge.s32.totalorder %s16, 4
      %s23 = sphi 0, %s35
      %s24 = sphi 0, %s31
      %s25 = sphi 0, %s23
      %s26 = sphi 0, %s24
      %s27 = sphi 0, %s25
      %s28 = sphi 0, %s26
      %s40 = sphi 0, %s42
      %s43 = sphi 0, %s40
      %s44 = sphi 0, %s43
      %s60 = sphi 0, %s44
      %s64 = sphi 0, %s64
      %s66 = sphi 0, %s64
      %s67 = sphi 0, %s66
      %s81 = sphi 0, %s67
      %s85 = sphi 0, %s85
      %s87 = sphi 0, %s85
      %s88 = sphi 0, %s87
      %s102 = sphi 0, %s88
      %s106 = sphi 0, %s106
      %s108 = sphi 0, %s106
      %s109 = sphi 0, %s108
      %s123 = sphi 0, %s109
      %s127 = sphi 0, %s127
      %s129 = sphi 0, %s127
      %s130 = sphi 0, %s129
      %s144 = sphi 0, %s130
      %s148 = sphi 0, %s148
      %s150 = sphi 0, %s148
      %s151 = sphi 0, %s150
      %s165 = sphi 0, %s151
      %s169 = sphi 0, %s169
      %s171 = sphi 0, %s169
      %s172 = sphi 0, %s171
      %s186 = sphi 0, %s172
      %s194 = sphi 0, %s196
      %s197 = sphi 0, %s194
      %s198 = sphi 0, %s197
      %s214 = sphi 0, %s198
    $region4: #{tpu_custom_call.1} parent=1 // loop_header_branch
      %19 = sbr.rel (%p17) target = $region8
    $region5: #{tpu_custom_call.1} parent=1 // loop_body
      %s21 = ssub.s32 %s16, 1
      %s22 = ssub.s32 %s16, 2
      %s29 = sadd.s32 1, %s24
      %p30 = scmp.ge.s32.totalorder %s29, 1
      %s31 = scalar_select %p30, 0, %s29
      %s32 = sadd.s32 1, %s23
      %s33 = scalar_select %p30, %s32, %s23
      %p34 = scmp.ge.s32.totalorder %s33, 2
      %s35 = scalar_select %p34, 0, %s33
      %s36 = ssub.s32 %s23, %s35
      %s37 = ssub.s32 %s24, %s31
      %s38 = sor.u32 %s36, %s37
      %p39 = scmp.eq.s32.totalorder %s38, 0
      %s41 = sadd.s32 %s40, 1
      %s42 = scalar_select %p39, %s40, %s41
      %p45 = pneg %p39
      %p46 = scmp.eq.s32.totalorder %s16, 1
      %p47 = por %p45, %p46
      %p48 = scmp.ne.s32.totalorder %s40, %s43
      %p49 = scmp.eq.s32.totalorder %s16, 0
      %p50 = por %p48, %p49
      %p51 = scmp.ne.s32.totalorder %s40, %s43
      %p52 = scmp.eq.s32.totalorder %s21, 1
      %p53 = por %p51, %p52
      %p54 = scmp.ne.s32.totalorder %s43, %s44
      %p55 = scmp.eq.s32.totalorder %s21, 0
      %p56 = por %p54, %p55
      %p57 = scmp.ne.s32.totalorder %s43, %s44
      %p58 = scmp.eq.s32.totalorder %s22, 1
      %p59 = por %p57, %p58
      %p61 = scmp.ne.s32.totalorder %s44, %s60
      %p62 = scmp.eq.s32.totalorder %s22, 0
      %p63 = por %p61, %p62
      %s65 = sadd.s32 %s64, 1
      %p68 = scmp.eq.s32.totalorder %s16, 1
      %p69 = scmp.ne.s32.totalorder %s64, %s66
      %p70 = scmp.eq.s32.totalorder %s16, 0
      %p71 = por %p69, %p70
      %p72 = scmp.ne.s32.totalorder %s64, %s66
      %p73 = scmp.eq.s32.totalorder %s21, 1
      %p74 = por %p72, %p73
      %p75 = scmp.ne.s32.totalorder %s66, %s67
      %p76 = scmp.eq.s32.totalorder %s21, 0
      %p77 = por %p75, %p76
      %p78 = scmp.ne.s32.totalorder %s66, %s67
      %p79 = scmp.eq.s32.totalorder %s22, 1
      %p80 = por %p78, %p79
      %p82 = scmp.ne.s32.totalorder %s67, %s81
      %p83 = scmp.eq.s32.totalorder %s22, 0
      %p84 = por %p82, %p83
      %s86 = sadd.s32 %s85, 1
      %p89 = scmp.eq.s32.totalorder %s16, 1
      %p90 = scmp.ne.s32.totalorder %s85, %s87
      %p91 = scmp.eq.s32.totalorder %s16, 0
      %p92 = por %p90, %p91
      %p93 = scmp.ne.s32.totalorder %s85, %s87
      %p94 = scmp.eq.s32.totalorder %s21, 1
      %p95 = por %p93, %p94
      %p96 = scmp.ne.s32.totalorder %s87, %s88
      %p97 = scmp.eq.s32.totalorder %s21, 0
      %p98 = por %p96, %p97
      %p99 = scmp.ne.s32.totalorder %s87, %s88
      %p100 = scmp.eq.s32.totalorder %s22, 1
      %p101 = por %p99, %p100
      %p103 = scmp.ne.s32.totalorder %s88, %s102
      %p104 = scmp.eq.s32.totalorder %s22, 0
      %p105 = por %p103, %p104
      %s107 = sadd.s32 %s106, 1
      %p110 = scmp.eq.s32.totalorder %s16, 1
      %p111 = scmp.ne.s32.totalorder %s106, %s108
      %p112 = scmp.eq.s32.totalorder %s16, 0
      %p113 = por %p111, %p112
      %p114 = scmp.ne.s32.totalorder %s106, %s108
      %p115 = scmp.eq.s32.totalorder %s21, 1
      %p116 = por %p114, %p115
      %p117 = scmp.ne.s32.totalorder %s108, %s109
      %p118 = scmp.eq.s32.totalorder %s21, 0
      %p119 = por %p117, %p118
      %p120 = scmp.ne.s32.totalorder %s108, %s109
      %p121 = scmp.eq.s32.totalorder %s22, 1
      %p122 = por %p120, %p121
      %p124 = scmp.ne.s32.totalorder %s109, %s123
      %p125 = scmp.eq.s32.totalorder %s22, 0
      %p126 = por %p124, %p125
      %s128 = sadd.s32 %s127, 1
      %p131 = scmp.eq.s32.totalorder %s16, 1
      %p132 = scmp.ne.s32.totalorder %s127, %s129
      %p133 = scmp.eq.s32.totalorder %s16, 0
      %p134 = por %p132, %p133
      %p135 = scmp.ne.s32.totalorder %s127, %s129
      %p136 = scmp.eq.s32.totalorder %s21, 1
      %p137 = por %p135, %p136
      %p138 = scmp.ne.s32.totalorder %s129, %s130
      %p139 = scmp.eq.s32.totalorder %s21, 0
      %p140 = por %p138, %p139
      %p141 = scmp.ne.s32.totalorder %s129, %s130
      %p142 = scmp.eq.s32.totalorder %s22, 1
      %p143 = por %p141, %p142
      %p145 = scmp.ne.s32.totalorder %s130, %s144
      %p146 = scmp.eq.s32.totalorder %s22, 0
      %p147 = por %p145, %p146
      %s149 = sadd.s32 %s148, 1
      %p152 = scmp.eq.s32.totalorder %s16, 1
      %p153 = scmp.ne.s32.totalorder %s148, %s150
      %p154 = scmp.eq.s32.totalorder %s16, 0
      %p155 = por %p153, %p154
      %p156 = scmp.ne.s32.totalorder %s148, %s150
      %p157 = scmp.eq.s32.totalorder %s21, 1
      %p158 = por %p156, %p157
      %p159 = scmp.ne.s32.totalorder %s150, %s151
      %p160 = scmp.eq.s32.totalorder %s21, 0
      %p161 = por %p159, %p160
      %p162 = scmp.ne.s32.totalorder %s150, %s151
      %p163 = scmp.eq.s32.totalorder %s22, 1
      %p164 = por %p162, %p163
      %p166 = scmp.ne.s32.totalorder %s151, %s165
      %p167 = scmp.eq.s32.totalorder %s22, 0
      %p168 = por %p166, %p167
      %s170 = sadd.s32 %s169, 1
      %p173 = scmp.eq.s32.totalorder %s16, 1
      %p174 = scmp.ne.s32.totalorder %s169, %s171
      %p175 = scmp.eq.s32.totalorder %s16, 0
      %p176 = por %p174, %p175
      %p177 = scmp.ne.s32.totalorder %s169, %s171
      %p178 = scmp.eq.s32.totalorder %s21, 1
      %p179 = por %p177, %p178
      %p180 = scmp.ne.s32.totalorder %s171, %s172
      %p181 = scmp.eq.s32.totalorder %s21, 0
      %p182 = por %p180, %p181
      %p183 = scmp.ne.s32.totalorder %s171, %s172
      %p184 = scmp.eq.s32.totalorder %s22, 1
      %p185 = por %p183, %p184
      %p187 = scmp.ne.s32.totalorder %s172, %s186
      %p188 = scmp.eq.s32.totalorder %s22, 0
      %p189 = por %p187, %p188
      %s190 = ssub.s32 %s23, %s35
      %s191 = ssub.s32 %s24, %s31
      %s192 = sor.u32 %s190, %s191
      %p193 = scmp.eq.s32.totalorder %s192, 0
      %s195 = sadd.s32 %s194, 1
      %s196 = scalar_select %p193, %s194, %s195
      %p199 = pneg %p193
      %p200 = scmp.eq.s32.totalorder %s16, 1
      %p201 = por %p199, %p200
      %p202 = scmp.ne.s32.totalorder %s194, %s197
      %p203 = scmp.eq.s32.totalorder %s16, 0
      %p204 = por %p202, %p203
      %p205 = scmp.ne.s32.totalorder %s194, %s197
      %p206 = scmp.eq.s32.totalorder %s21, 1
      %p207 = por %p205, %p206
      %p208 = scmp.ne.s32.totalorder %s197, %s198
      %p209 = scmp.eq.s32.totalorder %s21, 0
      %p210 = por %p208, %p209
      %p211 = scmp.ne.s32.totalorder %s197, %s198
      %p212 = scmp.eq.s32.totalorder %s22, 1
      %p213 = por %p211, %p212
      %p215 = scmp.ne.s32.totalorder %s198, %s214
      %p216 = scmp.eq.s32.totalorder %s22, 0
      %p217 = por %p215, %p216
      %p218 = scmp.le.s32.totalorder 1, %s16
      %p219 = scmp.lt.s32.totalorder %s16, 3
      %p220 = pnand %p218, %p219
      %p221 = pneg %p220
      // Predicated region
      $region9: #{tpu_custom_call.1} parent=5 // pred_check
        _
      $region10: #{tpu_custom_call.1} parent=5 // pred_check_branch
        %223 = sbr.rel (%p220) target = $region12
      $region11: #{tpu_custom_call.1} parent=5 // pred_region
        %s224 = ssub.s32 %s16, 1
        // Predicated region
        $region13: #{tpu_custom_call.1} parent=11 // pred_check
          %p225 = pneg %p77
        $region14: #{tpu_custom_call.1} parent=11 // pred_check_branch
          %227 = sbr.rel (%p225) target = $region16
        $region15: #{tpu_custom_call.1} parent=11 // pred_region
          _
        $region16: #{tpu_custom_call.1} parent=11 // pred_fallthru
          _
        // Predicated region
        $region17: #{tpu_custom_call.1} parent=11 // pred_check
          %p228 = pneg %p98
        $region18: #{tpu_custom_call.1} parent=11 // pred_check_branch
          %230 = sbr.rel (%p228) target = $region20
        $region19: #{tpu_custom_call.1} parent=11 // pred_region
          _
        $region20: #{tpu_custom_call.1} parent=11 // pred_fallthru
          _
        // Predicated region
        $region21: #{tpu_custom_call.1} parent=11 // pred_check
          %p231 = pneg %p119
        $region22: #{tpu_custom_call.1} parent=11 // pred_check_branch
          %233 = sbr.rel (%p231) target = $region24
        $region23: #{tpu_custom_call.1} parent=11 // pred_region
          _
        $region24: #{tpu_custom_call.1} parent=11 // pred_fallthru
          _
        // Predicated region
        $region25: #{tpu_custom_call.1} parent=11 // pred_check
          %p234 = pneg %p140
        $region26: #{tpu_custom_call.1} parent=11 // pred_check_branch
          %236 = sbr.rel (%p234) target = $region28
        $region27: #{tpu_custom_call.1} parent=11 // pred_region
          _
        $region28: #{tpu_custom_call.1} parent=11 // pred_fallthru
          _
        // Predicated region
        $region29: #{tpu_custom_call.1} parent=11 // pred_check
          %p237 = pneg %p161
        $region30: #{tpu_custom_call.1} parent=11 // pred_check_branch
          %239 = sbr.rel (%p237) target = $region32
        $region31: #{tpu_custom_call.1} parent=11 // pred_region
          _
        $region32: #{tpu_custom_call.1} parent=11 // pred_fallthru
          _
        // Predicated region
        $region33: #{tpu_custom_call.1} parent=11 // pred_check
          %p240 = pneg %p182
        $region34: #{tpu_custom_call.1} parent=11 // pred_check_branch
          %242 = sbr.rel (%p240) target = $region36
        $region35: #{tpu_custom_call.1} parent=11 // pred_region
          _
        $region36: #{tpu_custom_call.1} parent=11 // pred_fallthru
          _
      $region12: #{tpu_custom_call.1} parent=5 // pred_fallthru
        _
      %p243 = scmp.lt.s32.totalorder %s16, 2
      // Predicated region
      $region37: #{tpu_custom_call.1} parent=5 // pred_check
        %p244 = pneg %p243
      $region38: #{tpu_custom_call.1} parent=5 // pred_check_branch
        %246 = sbr.rel (%p244) target = $region40
      $region39: #{tpu_custom_call.1} parent=5 // pred_region
        // Predicated region
        $region41: #{tpu_custom_call.1} parent=39 // pred_check
          %p247 = pneg %p50
        $region42: #{tpu_custom_call.1} parent=39 // pred_check_branch
          %249 = sbr.rel (%p247) target = $region44
        $region43: #{tpu_custom_call.1} parent=39 // pred_region
          %p250 = scmp.lt.s32.totalorder %s23, 1
          %s251 = scalar_select %p250, %s23, 1
          %p252 = scmp.lt.s32.totalorder %s24, 0
          %s253 = scalar_select %p252, %s24, 0
          %s254 = sadd.s32 %s253, %s251
          %s255 = smul.addr %s254, 4
          %s256 = scalar_lea.vmem %s0, %s255
        $region44: #{tpu_custom_call.1} parent=39 // pred_fallthru
          _
      $region40: #{tpu_custom_call.1} parent=5 // pred_fallthru
        _
      %p257 = scmp.le.s32.totalorder 1, %s16
      %p258 = scmp.lt.s32.totalorder %s16, 3
      %p259 = pnand %p257, %p258
      %p260 = pneg %p259
      // Predicated region
      $region45: #{tpu_custom_call.1} parent=5 // pred_check
        _
      $region46: #{tpu_custom_call.1} parent=5 // pred_check_branch
        %262 = sbr.rel (%p259) target = $region48
      $region47: #{tpu_custom_call.1} parent=5 // pred_region
        %s263 = ssub.s32 %s16, 1
        %p264 = scmp.lt.s32.totalorder %s25, 1
        %s265 = scalar_select %p264, %s25, 1
        %p266 = scmp.lt.s32.totalorder %s26, 0
        %s267 = scalar_select %p266, %s26, 0
        %s268 = sadd.s32 %s267, %s265
        %s269 = smul.addr %s268, 4
        %s270 = scalar_lea.vmem %s0, %s269
        %p271 = pneg %p56
        %p272 = pneg %p53
        %p273 = pneg %p77
        %p274 = pneg %p74
        %p275 = pneg %p98
        %p276 = pneg %p95
        %p277 = pneg %p119
        %p278 = pneg %p116
        %p279 = pneg %p140
        %p280 = pneg %p137
        %p281 = pneg %p161
        %p282 = pneg %p158
        %p283 = pneg %p182
        %p284 = pneg %p179
        %p285 = pneg %p210
        %p286 = pneg %p207
        %s287 = sand.u32 %s197, 1
        %s288 = scalar_lea.sflag [#allocation5], %s287
        %s289 = sand.u32 %s197, 1
        %s290 = smul.addr %s289, 8
        %s291 = scalar_lea.vmem [#allocation4], %s290
        %p292 = scmp.lt.s32.totalorder %s25, 1
        %s293 = scalar_select %p292, %s25, 1
        %p294 = scmp.lt.s32.totalorder %s26, 0
        %s295 = scalar_select %p294, %s26, 0
        %s296 = sadd.s32 %s295, %s293
        %s297 = smul.addr %s296, 4
        %s298 = scalar_lea.vmem %s0, %s297
        %p299 = scmp.eq.s32.totalorder %s25, 0
        // Predicated region
        $region49: #{tpu_custom_call.1} parent=47 // pred_check
          %p300 = pneg %p299
        $region50: #{tpu_custom_call.1} parent=47 // pred_check_branch
          %302 = sbr.rel (%p300) target = $region52
        $region51: #{tpu_custom_call.1} parent=47 // pred_region
          %vm303 = vcmask 27648
          %304 = vst.msk [vmem:[#allocation2] sm:$0xf] %vm303, 0.0
          %vm305 = vcmask 31744
          %306 = vst.msk [vmem:[#allocation3] sm:$0xff] %vm305, 0.0
          %vm307 = vcmask 11264
          %308 = vst.msk [vmem:[#allocation2 + $0x4] sm:$0xf] %vm307, 0.0
          %vm309 = vcmask 15360
          %310 = vst.msk [vmem:[#allocation3 + $0x8] sm:$0xff] %vm309, 0.0
        $region52: #{tpu_custom_call.1} parent=47 // pred_fallthru
          _
        %v311 = vld [vmem:[%s298] sm:$0xf]
        %313 = vrot.lane.b32.xlu0 %v311, 4
        %v314 = vpop.permute.xlu0 %313
        %vm316 = vcmask 125984
        %317 = vst.msk [vmem:[#allocation2] sm:$0xf] %vm316, %v314
        %v318 = vld [vmem:[%s298] sm:$0xf]
        %320 = vrot.lane.b32.xlu0 %v318, 2
        %v321 = vpop.permute.xlu0 %320
        %vm323 = vcmask 125968
        %324 = vst.msk [vmem:[#allocation2 + $0x4] sm:$0xf] %vm323, %v321
        %v325 = vld [vmem:[%s298] sm:$0xf]
        %vm326 = vcmask 125952
        %327 = vst.msk [vmem:[#allocation2 + $0x8] sm:$0xf] %vm326, %v325
        %v328 = vld [vmem:[%s1] sm:$0xff]
        %v329 = vld [vmem:[#allocation2] sm:$0xff]
        %v330 = vld [vmem:[#allocation2 + $0x8] sm:$0xf]
        %v331 = vld [vmem:[%s2] sm:$0xff]
        %333 = vset.pattern.permute.xlu0 0
        %334 = vperm.xlu0 %333, %v331
        %v335 = vpop.permute.xlu0 %334
        %vm337 = vcmask 97280
        %v339 = vsel %vm337, %v328, 0
        %vm341 = vcmask 1043456
        %v343 = vsel %vm341, %v330, 0
        %345 = vmatprep.subr.mxu0 0.0
        %346 = vmatpush1.msra.mxu0 0.0
        %347 = vmatprep.subr.mxu0 0.0
        %348 = vmatpush1.msra.mxu0 0.0
        %349 = vmatprep.subr.mxu0 0.0
        %350 = vmatpush1.msra.mxu0 0.0
        %351 = vmatprep.subr.mxu0 0.0
        %352 = vmatpush1.msra.mxu0 0.0
        %353 = vmatprep.subr.mxu0 0.0
        %354 = vmatpush1.msra.mxu0 0.0
        %355 = vmatprep.subr.mxu0 0.0
        %356 = vmatpush1.msra.mxu0 0.0
        %357 = vmatprep.subr.mxu0 0.0
        %358 = vmatpush1.msra.mxu0 0.0
        %359 = vmatprep.subr.mxu0 0.0
        %360 = vmatpush1.msra.mxu0 0.0
        %361 = vmatprep.subr.mxu0 0.0
        %362 = vmatpush1.msra.mxu0 0.0
        %363 = vmatprep.subr.mxu0 0.0
        %364 = vmatpush1.msra.mxu0 0.0
        %365 = vmatprep.subr.mxu0 0.0
        %366 = vmatpush1.msra.mxu0 0.0
        %367 = vmatprep.subr.mxu0 0.0
        %368 = vmatpush1.msra.mxu0 0.0
        %369 = vmatprep.subr.mxu0 0.0
        %370 = vmatpush1.msra.mxu0 0.0
        %371 = vmatprep.subr.mxu0 0.0
        %372 = vmatpush1.msra.mxu0 0.0
        %373 = vmatprep.subr.mxu0 0.0
        %374 = vmatpush1.msra.mxu0 %v343
        %375 = vmatprep.subr.mxu0 0.0
        %376 = vmatpush1.msra.mxu0 %v329
        %377 = vmatprep.subr.mxu0 0.0
        %378 = vmatpush2.msra.mxu0 0.0
        %379 = vmatprep.subr.mxu0 0.0
        %380 = vmatpush2.msra.mxu0 0.0
        %381 = vmatprep.subr.mxu0 0.0
        %382 = vmatpush2.msra.mxu0 0.0
        %383 = vmatprep.subr.mxu0 0.0
        %384 = vmatpush2.msra.mxu0 0.0
        %385 = vmatprep.subr.mxu0 0.0
        %386 = vmatpush2.msra.mxu0 0.0
        %387 = vmatprep.subr.mxu0 0.0
        %388 = vmatpush2.msra.mxu0 0.0
        %389 = vmatprep.subr.mxu0 0.0
        %390 = vmatpush2.msra.mxu0 0.0
        %391 = vmatprep.subr.mxu0 0.0
        %392 = vmatpush2.msra.mxu0 0.0
        %393 = vmatprep.subr.mxu0 0.0
        %394 = vmatpush2.msra.mxu0 0.0
        %395 = vmatprep.subr.mxu0 0.0
        %396 = vmatpush2.msra.mxu0 0.0
        %397 = vmatprep.subr.mxu0 0.0
        %398 = vmatpush2.msra.mxu0 0.0
        %399 = vmatprep.subr.mxu0 0.0
        %400 = vmatpush2.msra.mxu0 0.0
        %401 = vmatprep.subr.mxu0 0.0
        %402 = vmatpush2.msra.mxu0 0.0
        %403 = vmatprep.subr.mxu0 0.0
        %404 = vmatpush2.msra.mxu0 0.0
        %405 = vmatprep.subr.mxu0 0.0
        %406 = vmatpush2.msra.mxu0 0.0
        %407 = vmatprep.subr.mxu0 0.0
        %408 = vmatpush2.msra.mxu0 0.0
        %409 = vmatprep.mubr.f32.mxu0 0.0
        %410 = vmatmul.mubr.f32.gmra.mxu0 %v339
        %v411 = vpop.f32.mrf.mxu0
        %v412 = vadd.f32 %v335, %v411
        %v413 = vpop.f32.mrf.mxu0
        %414 = vdwg.mxu0
        %v415 = vmax.f32 %v412, 0.0
        %vm416 = vcmask 130048
        %417 = vst.msk [vmem:[#allocation3 + $0x10] sm:$0xff] %vm416, %v415
        %v418 = vld [vmem:[#allocation3 + $0x10] sm:$0xff]
        %420 = vrot.lane.b32.xlu0 %v418, 4
        %v421 = vpop.permute.xlu0 %420
        %vm423 = vcmask 130080
        %424 = vst.msk [vmem:[#allocation3] sm:$0xff] %vm423, %v421
        %v425 = vld [vmem:[#allocation3 + $0x10] sm:$0xff]
        %427 = vrot.lane.b32.xlu0 %v425, 2
        %v428 = vpop.permute.xlu0 %427
        %vm430 = vcmask 130064
        %431 = vst.msk [vmem:[#allocation3 + $0x8] sm:$0xff] %vm430, %v428
        %v432 = vld [vmem:[%s3] sm:$0xff]
        %v433 = vld [vmem:[#allocation3] sm:$0xff]
        %v434 = vld [vmem:[#allocation3 + $0x8] sm:$0xff]
        %v435 = vld [vmem:[#allocation3 + $0x10] sm:$0xff]
        %v436 = vld [vmem:[%s4] sm:$0xff]
        %438 = vset.pattern.permute.xlu0 0
        %439 = vperm.xlu0 %438, %v436
        %v440 = vpop.permute.xlu0 %439
        %vm442 = vcmask 195584
        %v444 = vsel %vm442, %v432, 0
        %446 = vmatprep.subr.mxu0 0.0
        %447 = vmatpush1.msra.mxu0 0.0
        %448 = vmatprep.subr.mxu0 0.0
        %449 = vmatpush1.msra.mxu0 0.0
        %450 = vmatprep.subr.mxu0 0.0
        %451 = vmatpush1.msra.mxu0 0.0
        %452 = vmatprep.subr.mxu0 0.0
        %453 = vmatpush1.msra.mxu0 0.0
        %454 = vmatprep.subr.mxu0 0.0
        %455 = vmatpush1.msra.mxu0 0.0
        %456 = vmatprep.subr.mxu0 0.0
        %457 = vmatpush1.msra.mxu0 0.0
        %458 = vmatprep.subr.mxu0 0.0
        %459 = vmatpush1.msra.mxu0 0.0
        %460 = vmatprep.subr.mxu0 0.0
        %461 = vmatpush1.msra.mxu0 0.0
        %462 = vmatprep.subr.mxu0 0.0
        %463 = vmatpush1.msra.mxu0 0.0
        %464 = vmatprep.subr.mxu0 0.0
        %465 = vmatpush1.msra.mxu0 0.0
        %466 = vmatprep.subr.mxu0 0.0
        %467 = vmatpush1.msra.mxu0 0.0
        %468 = vmatprep.subr.mxu0 0.0
        %469 = vmatpush1.msra.mxu0 0.0
        %470 = vmatprep.subr.mxu0 0.0
        %471 = vmatpush1.msra.mxu0 0.0
        %472 = vmatprep.subr.mxu0 0.0
        %473 = vmatpush1.msra.mxu0 %v435
        %474 = vmatprep.subr.mxu0 0.0
        %475 = vmatpush1.msra.mxu0 %v434
        %476 = vmatprep.subr.mxu0 0.0
        %477 = vmatpush1.msra.mxu0 %v433
        %478 = vmatprep.subr.mxu0 0.0
        %479 = vmatpush2.msra.mxu0 0.0
        %480 = vmatprep.subr.mxu0 0.0
        %481 = vmatpush2.msra.mxu0 0.0
        %482 = vmatprep.subr.mxu0 0.0
        %483 = vmatpush2.msra.mxu0 0.0
        %484 = vmatprep.subr.mxu0 0.0
        %485 = vmatpush2.msra.mxu0 0.0
        %486 = vmatprep.subr.mxu0 0.0
        %487 = vmatpush2.msra.mxu0 0.0
        %488 = vmatprep.subr.mxu0 0.0
        %489 = vmatpush2.msra.mxu0 0.0
        %490 = vmatprep.subr.mxu0 0.0
        %491 = vmatpush2.msra.mxu0 0.0
        %492 = vmatprep.subr.mxu0 0.0
        %493 = vmatpush2.msra.mxu0 0.0
        %494 = vmatprep.subr.mxu0 0.0
        %495 = vmatpush2.msra.mxu0 0.0
        %496 = vmatprep.subr.mxu0 0.0
        %497 = vmatpush2.msra.mxu0 0.0
        %498 = vmatprep.subr.mxu0 0.0
        %499 = vmatpush2.msra.mxu0 0.0
        %500 = vmatprep.subr.mxu0 0.0
        %501 = vmatpush2.msra.mxu0 0.0
        %502 = vmatprep.subr.mxu0 0.0
        %503 = vmatpush2.msra.mxu0 0.0
        %504 = vmatprep.subr.mxu0 0.0
        %505 = vmatpush2.msra.mxu0 0.0
        %506 = vmatprep.subr.mxu0 0.0
        %507 = vmatpush2.msra.mxu0 0.0
        %508 = vmatprep.subr.mxu0 0.0
        %509 = vmatpush2.msra.mxu0 0.0
        %510 = vmatprep.mubr.f32.mxu0 0.0
        %511 = vmatmul.mubr.f32.gmra.mxu0 %v444
        %v512 = vpop.f32.mrf.mxu0
        %v513 = vadd.f32 %v440, %v512
        %v514 = vpop.f32.mrf.mxu0
        %515 = vdwg.mxu0
        %v516 = vmax.f32 %v513, 0.0
        %v517 = vld [vmem:[%s5] sm:$0xff]
        %v518 = vld [vmem:[#allocation2 + $0x8] sm:$0xf]
        %v519 = vld [vmem:[%s6] sm:$0xff]
        %521 = vset.pattern.permute.xlu0 0
        %522 = vperm.xlu0 %521, %v519
        %v523 = vpop.permute.xlu0 %522
        %vm525 = vcmask 31744
        %v527 = vsel %vm525, %v517, 0
        %v530 = vsel %vm341, %v518, 0
        %532 = vmatprep.subr.mxu0 0.0
        %533 = vmatpush1.msra.mxu0 0.0
        %534 = vmatprep.subr.mxu0 0.0
        %535 = vmatpush1.msra.mxu0 0.0
        %536 = vmatprep.subr.mxu0 0.0
        %537 = vmatpush1.msra.mxu0 0.0
        %538 = vmatprep.subr.mxu0 0.0
        %539 = vmatpush1.msra.mxu0 0.0
        %540 = vmatprep.subr.mxu0 0.0
        %541 = vmatpush1.msra.mxu0 0.0
        %542 = vmatprep.subr.mxu0 0.0
        %543 = vmatpush1.msra.mxu0 0.0
        %544 = vmatprep.subr.mxu0 0.0
        %545 = vmatpush1.msra.mxu0 0.0
        %546 = vmatprep.subr.mxu0 0.0
        %547 = vmatpush1.msra.mxu0 0.0
        %548 = vmatprep.subr.mxu0 0.0
        %549 = vmatpush1.msra.mxu0 0.0
        %550 = vmatprep.subr.mxu0 0.0
        %551 = vmatpush1.msra.mxu0 0.0
        %552 = vmatprep.subr.mxu0 0.0
        %553 = vmatpush1.msra.mxu0 0.0
        %554 = vmatprep.subr.mxu0 0.0
        %555 = vmatpush1.msra.mxu0 0.0
        %556 = vmatprep.subr.mxu0 0.0
        %557 = vmatpush1.msra.mxu0 0.0
        %558 = vmatprep.subr.mxu0 0.0
        %559 = vmatpush1.msra.mxu0 0.0
        %560 = vmatprep.subr.mxu0 0.0
        %561 = vmatpush1.msra.mxu0 0.0
        %562 = vmatprep.subr.mxu0 0.0
        %563 = vmatpush1.msra.mxu0 %v530
        %564 = vmatprep.subr.mxu0 0.0
        %565 = vmatpush2.msra.mxu0 0.0
        %566 = vmatprep.subr.mxu0 0.0
        %567 = vmatpush2.msra.mxu0 0.0
        %568 = vmatprep.subr.mxu0 0.0
        %569 = vmatpush2.msra.mxu0 0.0
        %570 = vmatprep.subr.mxu0 0.0
        %571 = vmatpush2.msra.mxu0 0.0
        %572 = vmatprep.subr.mxu0 0.0
        %573 = vmatpush2.msra.mxu0 0.0
        %574 = vmatprep.subr.mxu0 0.0
        %575 = vmatpush2.msra.mxu0 0.0
        %576 = vmatprep.subr.mxu0 0.0
        %577 = vmatpush2.msra.mxu0 0.0
        %578 = vmatprep.subr.mxu0 0.0
        %579 = vmatpush2.msra.mxu0 0.0
        %580 = vmatprep.subr.mxu0 0.0
        %581 = vmatpush2.msra.mxu0 0.0
        %582 = vmatprep.subr.mxu0 0.0
        %583 = vmatpush2.msra.mxu0 0.0
        %584 = vmatprep.subr.mxu0 0.0
        %585 = vmatpush2.msra.mxu0 0.0
        %586 = vmatprep.subr.mxu0 0.0
        %587 = vmatpush2.msra.mxu0 0.0
        %588 = vmatprep.subr.mxu0 0.0
        %589 = vmatpush2.msra.mxu0 0.0
        %590 = vmatprep.subr.mxu0 0.0
        %591 = vmatpush2.msra.mxu0 0.0
        %592 = vmatprep.subr.mxu0 0.0
        %593 = vmatpush2.msra.mxu0 0.0
        %594 = vmatprep.subr.mxu0 0.0
        %595 = vmatpush2.msra.mxu0 0.0
        %596 = vmatprep.mubr.f32.mxu0 0.0
        %597 = vmatmul.mubr.f32.gmra.mxu0 %v527
        %v598 = vpop.f32.mrf.mxu0
        %v599 = vadd.f32 %v523, %v598
        %v600 = vpop.f32.mrf.mxu0
        %601 = vdwg.mxu0
        %v602 = vadd.f32 %v516, %v599
        %v603 = vmax.f32 %v602, 0.0
        %604 = vst.msk [vmem:[%s291] sm:$0xff] %vm416, %v603
        %s605 = sand.u32 %s197, 1
        %s606 = scalar_lea.sflag [#allocation5], %s605
        %s607 = sand.u32 %s197, 1
        %s608 = smul.addr %s607, 8
        %s609 = scalar_lea.vmem [#allocation4], %s608
        // Predicated region
        $region53: #{tpu_custom_call.1} parent=47 // pred_check
          %p610 = pneg %p207
        $region54: #{tpu_custom_call.1} parent=47 // pred_check_branch
          %612 = sbr.rel (%p610) target = $region56
        $region55: #{tpu_custom_call.1} parent=47 // pred_region
          %s614 = ssub.s32 128, 128
          %615 = vsyncadd %s606, %s614
          %s616 = sadd.s32 %s26, %s25
          %s617 = smul.addr %s616, 128
          %s618 = scalar_lea.hbm %s7, %s617
          %s620 = sshll.u32 %s609, 4
          %s621 = int_to_ptr.vmem [resolvable:$true] %s620
          %623 = dma.vmem_to_hbm [thread:$0]  %s621, 128, %s618, %s606
        $region56: #{tpu_custom_call.1} parent=47 // pred_fallthru
          _
      $region48: #{tpu_custom_call.1} parent=5 // pred_fallthru
        _
      %p624 = scmp.le.s32.totalorder 2, %s16
      // Predicated region
      $region57: #{tpu_custom_call.1} parent=5 // pred_check
        %p625 = pneg %p624
      $region58: #{tpu_custom_call.1} parent=5 // pred_check_branch
        %627 = sbr.rel (%p625) target = $region60
      $region59: #{tpu_custom_call.1} parent=5 // pred_region
        %s628 = ssub.s32 %s16, 2
        // Predicated region
        $region61: #{tpu_custom_call.1} parent=59 // pred_check
          %p629 = pneg %p213
        $region62: #{tpu_custom_call.1} parent=59 // pred_check_branch
          %631 = sbr.rel (%p629) target = $region64
        $region63: #{tpu_custom_call.1} parent=59 // pred_region
          %s632 = sand.u32 %s198, 1
          %s633 = scalar_lea.sflag [#allocation5], %s632
          %s634 = sand.u32 %s198, 1
          %s635 = smul.addr %s634, 8
          %s636 = scalar_lea.vmem [#allocation4], %s635
          %637 = dma.done %s633, 128
        $region64: #{tpu_custom_call.1} parent=59 // pred_fallthru
          _
      $region60: #{tpu_custom_call.1} parent=5 // pred_fallthru
        _
    $region6: #{tpu_custom_call.1} parent=1 // loop_footer
      %s20 = sadd.s32 1, %s16
    $region7: #{tpu_custom_call.1} parent=1 // loop_footer_branch
      %15 = sbr.rel target = $region3
    $region8: #{tpu_custom_call.1} parent=1 // loop_exit
      _
    %638 = vsyncpa [#allocation5], 1
    %s639 = scalar_lea.sflag [#allocation5], 1
    %640 = vsyncpa %s639, 1

</llo_original>
